<compile_context>
chip_gen: v7x
topology: tpu7x:2x2x1
jax: 0.10.0
libtpu: 0.0.40
codegen_flags: <defaults>
</compile_context>

<pallas_src>
import functools

import jax
import jax.numpy as jnp
from jax import lax
from jax.experimental import pallas as pl
from jax.experimental.pallas import tpu as pltpu


def _round_up(x: int, m: int) -> int:
    return ((x + m - 1) // m) * m


def _geglu_kernel(x_ref, wh_ref, wg_ref, bh_ref, bg_ref, o_ref, acc_h, acc_g):
    """Grid = (N//tn, M//tm, K//tk); K is the reduction axis (innermost)."""
    k = pl.program_id(2)

    @pl.when(k == 0)
    def _():
        acc_h[...] = jnp.zeros_like(acc_h)
        acc_g[...] = jnp.zeros_like(acc_g)

    x = x_ref[...]  # (tm, tk), bf16 (or caller compute dtype)
    acc_h[...] += jnp.dot(x, wh_ref[...], preferred_element_type=jnp.float32)
    acc_g[...] += jnp.dot(x, wg_ref[...], preferred_element_type=jnp.float32)

    @pl.when(k == pl.num_programs(2) - 1)
    def _():
        h = acc_h[...] + bh_ref[...]
        g = acc_g[...] + bg_ref[...]
        # Exact erf GELU (matches F.gelu default); stays in f32.
        gelu_g = 0.5 * g * (1.0 + lax.erf(g * jnp.float32(0.7071067811865476)))
        o_ref[...] = (h * gelu_g).astype(o_ref.dtype)


@functools.partial(jax.jit, static_argnames=("out_dtype", "tm", "tn", "tk"))
def geglu_pallas(x2d, w_h, w_g, b_h, b_g, *, out_dtype=jnp.float32,
                 tm=512, tn=256, tk=512):
    """x2d: (M, K) compute dtype; w_h/w_g: (K, N) compute dtype;
    b_h/b_g: (1, N) f32. Returns (M, N) in out_dtype."""
    M, K = x2d.shape
    Kw, N = w_h.shape
    assert Kw == K

    # Effective tiles: shrink to the (padded) problem size for small shapes,
    # keeping (8, 128) alignment on the trailing dims.
    tm_e = min(tm, _round_up(M, 8))
    tn_e = min(tn, _round_up(N, 128))
    tk_e = min(tk, _round_up(K, 128))

    Mp, Np, Kp = _round_up(M, tm_e), _round_up(N, tn_e), _round_up(K, tk_e)

    # Zero-padding is exact for the matmul; padded rows/cols are sliced off.
    if (Mp, Kp) != (M, K):
        x2d = jnp.pad(x2d, ((0, Mp - M), (0, Kp - K)))
    if (Kp, Np) != (K, N):
        w_h = jnp.pad(w_h, ((0, Kp - K), (0, Np - N)))
        w_g = jnp.pad(w_g, ((0, Kp - K), (0, Np - N)))
    if Np != N:
        b_h = jnp.pad(b_h, ((0, 0), (0, Np - N)))
        b_g = jnp.pad(b_g, ((0, 0), (0, Np - N)))

    # Weight-stationary loop nest: N (j) outer, M (i) inner, K (k) reduction.
    grid = (Np // tn_e, Mp // tm_e, Kp // tk_e)

    out = pl.pallas_call(
        _geglu_kernel,
        out_shape=jax.ShapeDtypeStruct((Mp, Np), out_dtype),
        grid_spec=pltpu.PrefetchScalarGridSpec(
            num_scalar_prefetch=0,
            grid=grid,
            in_specs=[
                pl.BlockSpec((tm_e, tk_e), lambda j, i, k: (i, k)),  # x
                pl.BlockSpec((tk_e, tn_e), lambda j, i, k: (k, j)),  # w_h
                pl.BlockSpec((tk_e, tn_e), lambda j, i, k: (k, j)),  # w_g
                pl.BlockSpec((1, tn_e), lambda j, i, k: (0, j)),     # b_h
                pl.BlockSpec((1, tn_e), lambda j, i, k: (0, j)),     # b_g
            ],
            out_specs=pl.BlockSpec((tm_e, tn_e), lambda j, i, k: (i, j)),
            scratch_shapes=[
                pltpu.VMEM((tm_e, tn_e), jnp.float32),  # acc_h
                pltpu.VMEM((tm_e, tn_e), jnp.float32),  # acc_g
            ],
        ),
        compiler_params=pltpu.CompilerParams(
            dimension_semantics=("parallel", "parallel", "arbitrary"),
            vmem_limit_bytes=48 * 1024 * 1024,  # headroom; safe on v5e/v6e/v7x
        ),
    )(x2d, w_h, w_g, b_h, b_g)

    if (Mp, Np) != (M, N):
        out = out[:M, :N]
    return out


def prepare_geglu_params(weight, bias, compute_dtype=jnp.bfloat16):
    """One-time prep (hoisted out of the forward path): transpose the PyTorch
    nn.Linear weight (2*dim_out, dim_in) -> (dim_in, dim_out) halves, cast the
    matmul operands to the MXU compute dtype, keep biases in f32."""
    dim_out = weight.shape[0] // 2
    w_t = jnp.asarray(weight).T.astype(compute_dtype)      # (dim_in, 2*dim_out)
    w_h = w_t[:, :dim_out]                                  # .chunk(2): hidden
    w_g = w_t[:, dim_out:]                                  # gate
    b = jnp.asarray(bias).astype(jnp.float32)
    b_h = b[:dim_out].reshape(1, dim_out)
    b_g = b[dim_out:].reshape(1, dim_out)
    return w_h, w_g, b_h, b_g


def geglu_forward(hidden_states, w_h, w_g, b_h, b_g,
                  compute_dtype=jnp.bfloat16):
    """hidden_states: (..., dim_in). Returns (..., dim_out) in the input dtype."""
    lead = hidden_states.shape[:-1]
    dim_in = hidden_states.shape[-1]
    dim_out = w_h.shape[1]
    x2d = hidden_states.reshape(-1, dim_in).astype(compute_dtype)
    out2d = geglu_pallas(x2d, w_h, w_g, b_h, b_g,
                         out_dtype=hidden_states.dtype)
    return out2d.reshape(*lead, dim_out)


if __name__ == "__main__":
    # Small shapes consistent with the module: (batch, seq, dim_in) -> (batch, seq, dim_out)
    batch, seq, dim_in, dim_out = 2, 8, 32, 32

    key = jax.random.PRNGKey(0)
    kx, kw, kb = jax.random.split(key, 3)

    x = jax.random.normal(kx, (batch, seq, dim_in), dtype=jnp.float32)

    # Deterministic nn.Linear-style init: U(-1/sqrt(dim_in), 1/sqrt(dim_in))
    bound = 1.0 / (dim_in ** 0.5)
    weight = jax.random.uniform(kw, (dim_out * 2, dim_in),
                                minval=-bound, maxval=bound, dtype=jnp.float32)
    bias = jax.random.uniform(kb, (dim_out * 2,),
                              minval=-bound, maxval=bound, dtype=jnp.float32)

    # One-time weight prep (transpose / chunk / bf16 cast hoisted out of forward).
    w_h, w_g, b_h, b_g = prepare_geglu_params(weight, bias)

    out = geglu_forward(x, w_h, w_g, b_h, b_g)
    out = jax.block_until_ready(out)
    assert out.shape == (batch, seq, dim_out)

    # Reference 1: same bf16-input / f32-accumulate semantics as the kernel.
    xb = x.astype(jnp.bfloat16).astype(jnp.float32).reshape(-1, dim_in)
    h_ref = xb @ w_h.astype(jnp.float32) + b_h
    g_ref = xb @ w_g.astype(jnp.float32) + b_g
    gelu_ref = 0.5 * g_ref * (1.0 + lax.erf(g_ref / jnp.sqrt(2.0)))
    ref_bf16 = (h_ref * gelu_ref).reshape(batch, seq, dim_out)
    assert jnp.allclose(out, ref_bf16, atol=1e-4, rtol=1e-4), "mismatch vs bf16 reference"

    # Reference 2 (sanity): pure-f32 math, loose tolerance for bf16 operand rounding.
    proj = x @ weight.T + bias
    h_f, g_f = proj[..., :dim_out], proj[..., dim_out:]
    ref_f32 = h_f * (0.5 * g_f * (1.0 + lax.erf(g_f / jnp.sqrt(2.0))))
    assert jnp.allclose(out, ref_f32, atol=3e-2, rtol=3e-2), "mismatch vs f32 reference"

    print("KERNEL_OK")
</pallas_src>

<mosaic_0001>
module attributes {stable_mosaic.version = 11 : i64} {
  func.func @_geglu_kernel(%arg0: i32, %arg1: i32, %arg2: i32, %arg3: memref<16x128xbf16, #tpu.memory_space<vmem>>, %arg4: memref<128x128xbf16, #tpu.memory_space<vmem>>, %arg5: memref<128x128xbf16, #tpu.memory_space<vmem>>, %arg6: memref<1x128xf32, #tpu.memory_space<vmem>>, %arg7: memref<1x128xf32, #tpu.memory_space<vmem>>, %arg8: memref<16x128xf32, #tpu.memory_space<vmem>>, %arg9: memref<16x128xf32, #tpu.memory_space<vmem>>, %arg10: memref<16x128xf32, #tpu.memory_space<vmem>>) attributes {dimension_semantics = [#tpu.dimension_semantics<parallel>, #tpu.dimension_semantics<parallel>, #tpu.dimension_semantics<arbitrary>], iteration_bounds = array<i64: 1, 1, 1>, scalar_prefetch = 0 : i64, scratch_operands = 2 : i64, tpu.core_type = #tpu.core_type<tc>, window_params = [{transform_indices = @transform_0, window_bounds = array<i64: 16, 128>}, {transform_indices = @transform_1, window_bounds = array<i64: 128, 128>}, {transform_indices = @transform_2, window_bounds = array<i64: 128, 128>}, {transform_indices = @transform_3, window_bounds = array<i64: 1, 128>}, {transform_indices = @transform_4, window_bounds = array<i64: 1, 128>}, {transform_indices = @transform_5, window_bounds = array<i64: 16, 128>}]} {
    %c0_i32 = arith.constant 0 : i32
    %0 = arith.cmpi eq, %arg2, %c0_i32 : i32
    %1 = arith.extui %0 : i1 to i32
    %c0_i32_0 = arith.constant 0 : i32
    %2 = arith.cmpi ne, %1, %c0_i32_0 : i32
    scf.if %2 {
      %cst_17 = arith.constant 0.000000e+00 : f32
      %17 = vector.broadcast %cst_17 : f32 to vector<16x128xf32>
      %c0_18 = arith.constant 0 : index
      %c0_19 = arith.constant 0 : index
      %18 = vector.load %arg9[%c0_18, %c0_19] : memref<16x128xf32, #tpu.memory_space<vmem>>, vector<16x128xf32>
      tpu.vector_store %arg9[%c0_18, %c0_19], %17 {strides = array<i32>} : memref<16x128xf32, #tpu.memory_space<vmem>>, vector<16x128xf32>,
      %cst_20 = arith.constant 0.000000e+00 : f32
      %19 = vector.broadcast %cst_20 : f32 to vector<16x128xf32>
      %c0_21 = arith.constant 0 : index
      %c0_22 = arith.constant 0 : index
      %20 = vector.load %arg10[%c0_21, %c0_22] : memref<16x128xf32, #tpu.memory_space<vmem>>, vector<16x128xf32>
      tpu.vector_store %arg10[%c0_21, %c0_22], %19 {strides = array<i32>} : memref<16x128xf32, #tpu.memory_space<vmem>>, vector<16x128xf32>,
    } else {
    }
    %c0 = arith.constant 0 : index
    %c0_1 = arith.constant 0 : index
    %3 = vector.load %arg3[%c0, %c0_1] : memref<16x128xbf16, #tpu.memory_space<vmem>>, vector<16x128xbf16>
    %c0_2 = arith.constant 0 : index
    %c0_3 = arith.constant 0 : index
    %4 = vector.load %arg9[%c0_2, %c0_3] : memref<16x128xf32, #tpu.memory_space<vmem>>, vector<16x128xf32>
    %c0_4 = arith.constant 0 : index
    %c0_5 = arith.constant 0 : index
    %5 = vector.load %arg4[%c0_4, %c0_5] : memref<128x128xbf16, #tpu.memory_space<vmem>>, vector<128x128xbf16>
    %cst = arith.constant dense<0.000000e+00> : vector<16x128xf32>
    %6 = tpu.matmul %3, %5, %cst {dimension_numbers = #tpu.dot_dimension_numbers<[1], [0], [0], [1], [0, 0, 1, 1], [], []>} : vector<16x128xbf16>, vector<128x128xbf16>, vector<16x128xf32> -> vector<16x128xf32>
    %7 = arith.addf %4, %6 : vector<16x128xf32>
    %c0_6 = arith.constant 0 : index
    %c0_7 = arith.constant 0 : index
    %8 = vector.load %arg9[%c0_6, %c0_7] : memref<16x128xf32, #tpu.memory_space<vmem>>, vector<16x128xf32>
    tpu.vector_store %arg9[%c0_6, %c0_7], %7 {strides = array<i32>} : memref<16x128xf32, #tpu.memory_space<vmem>>, vector<16x128xf32>,
    %c0_8 = arith.constant 0 : index
    %c0_9 = arith.constant 0 : index
    %9 = vector.load %arg10[%c0_8, %c0_9] : memref<16x128xf32, #tpu.memory_space<vmem>>, vector<16x128xf32>
    %c0_10 = arith.constant 0 : index
    %c0_11 = arith.constant 0 : index
    %10 = vector.load %arg5[%c0_10, %c0_11] : memref<128x128xbf16, #tpu.memory_space<vmem>>, vector<128x128xbf16>
    %cst_12 = arith.constant dense<0.000000e+00> : vector<16x128xf32>
    %11 = tpu.matmul %3, %10, %cst_12 {dimension_numbers = #tpu.dot_dimension_numbers<[1], [0], [0], [1], [0, 0, 1, 1], [], []>} : vector<16x128xbf16>, vector<128x128xbf16>, vector<16x128xf32> -> vector<16x128xf32>
    %12 = arith.addf %9, %11 : vector<16x128xf32>
    %c0_13 = arith.constant 0 : index
    %c0_14 = arith.constant 0 : index
    %13 = vector.load %arg10[%c0_13, %c0_14] : memref<16x128xf32, #tpu.memory_space<vmem>>, vector<16x128xf32>
    tpu.vector_store %arg10[%c0_13, %c0_14], %12 {strides = array<i32>} : memref<16x128xf32, #tpu.memory_space<vmem>>, vector<16x128xf32>,
    %c0_i32_15 = arith.constant 0 : i32
    %14 = arith.cmpi eq, %arg2, %c0_i32_15 : i32
    %15 = arith.extui %14 : i1 to i32
    %c0_i32_16 = arith.constant 0 : i32
    %16 = arith.cmpi ne, %15, %c0_i32_16 : i32
    scf.if %16 {
      %c0_17 = arith.constant 0 : index
      %c0_18 = arith.constant 0 : index
      %17 = vector.load %arg9[%c0_17, %c0_18] : memref<16x128xf32, #tpu.memory_space<vmem>>, vector<16x128xf32>
      %c0_19 = arith.constant 0 : index
      %c0_20 = arith.constant 0 : index
      %18 = vector.load %arg6[%c0_19, %c0_20] : memref<1x128xf32, #tpu.memory_space<vmem>>, vector<1x128xf32>
      %19 = vector.broadcast %18 : vector<1x128xf32> to vector<16x128xf32>
      %20 = arith.addf %17, %19 : vector<16x128xf32>
      %c0_21 = arith.constant 0 : index
      %c0_22 = arith.constant 0 : index
      %21 = vector.load %arg10[%c0_21, %c0_22] : memref<16x128xf32, #tpu.memory_space<vmem>>, vector<16x128xf32>
      %c0_23 = arith.constant 0 : index
      %c0_24 = arith.constant 0 : index
      %22 = vector.load %arg7[%c0_23, %c0_24] : memref<1x128xf32, #tpu.memory_space<vmem>>, vector<1x128xf32>
      %23 = vector.broadcast %22 : vector<1x128xf32> to vector<16x128xf32>
      %24 = arith.addf %21, %23 : vector<16x128xf32>
      %cst_25 = arith.constant 5.000000e-01 : f32
      %25 = vector.broadcast %cst_25 : f32 to vector<16x128xf32>
      %26 = arith.mulf %25, %24 : vector<16x128xf32>
      %cst_26 = arith.constant 0.707106769 : f32
      %27 = vector.broadcast %cst_26 : f32 to vector<16x128xf32>
      %28 = arith.mulf %24, %27 : vector<16x128xf32>
      %29 = math.erf %28 : vector<16x128xf32>
      %cst_27 = arith.constant 1.000000e+00 : f32
      %30 = vector.broadcast %cst_27 : f32 to vector<16x128xf32>
      %31 = arith.addf %30, %29 : vector<16x128xf32>
      %32 = arith.mulf %26, %31 : vector<16x128xf32>
      %33 = arith.mulf %20, %32 : vector<16x128xf32>
      %c0_28 = arith.constant 0 : index
      %c0_29 = arith.constant 0 : index
      %34 = vector.load %arg8[%c0_28, %c0_29] : memref<16x128xf32, #tpu.memory_space<vmem>>, vector<16x128xf32>
      tpu.vector_store %arg8[%c0_28, %c0_29], %33 {strides = array<i32>} : memref<16x128xf32, #tpu.memory_space<vmem>>, vector<16x128xf32>,
    } else {
    }
    return
  }
  func.func @transform_0(%arg0: i32, %arg1: i32, %arg2: i32) -> (i32, i32) {
    %c0_i32 = arith.constant 0 : i32
    return %arg1, %arg2 : i32, i32
  }
  func.func @transform_1(%arg0: i32, %arg1: i32, %arg2: i32) -> (i32, i32) {
    %c0_i32 = arith.constant 0 : i32
    return %arg2, %arg0 : i32, i32
  }
  func.func @transform_2(%arg0: i32, %arg1: i32, %arg2: i32) -> (i32, i32) {
    %c0_i32 = arith.constant 0 : i32
    return %arg2, %arg0 : i32, i32
  }
  func.func @transform_3(%arg0: i32, %arg1: i32, %arg2: i32) -> (i32, i32) {
    %c0_i32 = arith.constant 0 : i32
    %c0_i32_0 = arith.constant 0 : i32
    return %c0_i32, %arg0 : i32, i32
  }
  func.func @transform_4(%arg0: i32, %arg1: i32, %arg2: i32) -> (i32, i32) {
    %c0_i32 = arith.constant 0 : i32
    %c0_i32_0 = arith.constant 0 : i32
    return %c0_i32, %arg0 : i32, i32
  }
  func.func @transform_5(%arg0: i32, %arg1: i32, %arg2: i32) -> (i32, i32) {
    %c0_i32 = arith.constant 0 : i32
    return %arg1, %arg0 : i32, i32
  }
}

</mosaic_0001>

<llo_original>
// kernel: geglu_pallas.1
$region0: #{geglu_pallas.1}
  #allocation0 [shape = 'u32[]', space=smem, size = 0x4, offset = 0x4, fixed_abs, tag = 'smem constant byte address 0x4 - core index']
  #allocation1 [shape = 'u32[144,128]{1,0:T(1,128)}', space=vmem, size = 0x12000, scoped, tag = 'internal scratch']
  #allocation2 [shape = 'f32[16,128]{1,0:T(8,128)}', space=vmem, size = 0x2000, scoped, tag = 'scratch operand']
  #allocation3 [shape = 'f32[16,128]{1,0:T(8,128)}', space=vmem, size = 0x2000, scoped, tag = 'scratch operand']
  %s0 = inlined_call_operand.vmem [shape: bf16[16,128], index: 0, kind: input, shape index: {}]
  %s1 = inlined_call_operand.vmem [shape: bf16[128,128], index: 1, kind: input, shape index: {}]
  %s2 = inlined_call_operand.vmem [shape: bf16[128,128], index: 2, kind: input, shape index: {}]
  %s3 = inlined_call_operand.vmem [shape: f32[1,128], index: 3, kind: input, shape index: {}]
  %s4 = inlined_call_operand.vmem [shape: f32[1,128], index: 4, kind: input, shape index: {}]
  %s5 = inlined_call_operand.hbm [shape: f32[16,128], index: 5, kind: output, shape index: {}]
  %s6 = sld [smem:[#allocation0]]
  $region38: #{geglu_pallas.1} parent=0
    _
  %s8 = ssub.s32 1, %s6
  %s9 = scalar_select 0, %s8, %s6
  $region1: #{geglu_pallas.1} parent=0
    #allocation4 [shape = 'u8[8192]{0}', space=vmem, size = 0x2000, scoped, tag = 'output window, operand 0, single buffered']
    #allocation5 [shape = 's32[1]{0}', space=sflag, size = 0x4, scoped, tag = 'scoped memory for geglu_pallas.1']
    %10 = vsyncpa [#allocation5], 0
    // Predicated region
    $region2: #{geglu_pallas.1} parent=1 // pred_check
      _
    $region3: #{geglu_pallas.1} parent=1 // pred_check_branch
      %12 = sbr.rel (0) target = $region5
    $region4: #{geglu_pallas.1} parent=1 // pred_region
      _
    $region5: #{geglu_pallas.1} parent=1 // pred_fallthru
      _
    // Predicated region
    $region6: #{geglu_pallas.1} parent=1 // pred_check
      _
    $region7: #{geglu_pallas.1} parent=1 // pred_check_branch
      %14 = sbr.rel (0) target = $region9
    $region8: #{geglu_pallas.1} parent=1 // pred_region
      _
    $region9: #{geglu_pallas.1} parent=1 // pred_fallthru
      _
    // Predicated region
    $region10: #{geglu_pallas.1} parent=1 // pred_check
      _
    $region11: #{geglu_pallas.1} parent=1 // pred_check_branch
      %16 = sbr.rel (0) target = $region13
    $region12: #{geglu_pallas.1} parent=1 // pred_region
      _
    $region13: #{geglu_pallas.1} parent=1 // pred_fallthru
      _
    // Predicated region
    $region14: #{geglu_pallas.1} parent=1 // pred_check
      _
    $region15: #{geglu_pallas.1} parent=1 // pred_check_branch
      %18 = sbr.rel (0) target = $region17
    $region16: #{geglu_pallas.1} parent=1 // pred_region
      _
    $region17: #{geglu_pallas.1} parent=1 // pred_fallthru
      _
    // Predicated region
    $region18: #{geglu_pallas.1} parent=1 // pred_check
      _
    $region19: #{geglu_pallas.1} parent=1 // pred_check_branch
      %20 = sbr.rel (0) target = $region21
    $region20: #{geglu_pallas.1} parent=1 // pred_region
      _
    $region21: #{geglu_pallas.1} parent=1 // pred_fallthru
      _
    %p22 = scmp.eq.s32.totalorder 0, 0
    // Predicated region
    $region22: #{geglu_pallas.1} parent=1 // pred_check
      %p23 = pneg %p22
    $region23: #{geglu_pallas.1} parent=1 // pred_check_branch
      %25 = sbr.rel (%p23) target = $region25
    $region24: #{geglu_pallas.1} parent=1 // pred_region
      %26 = vst [vmem:[#allocation2] sm:$0xff] 0.0
      %27 = vst [vmem:[#allocation2 + $0x8] sm:$0xff] 0.0
      %28 = vst [vmem:[#allocation3] sm:$0xff] 0.0
      %29 = vst [vmem:[#allocation3 + $0x8] sm:$0xff] 0.0
    $region25: #{geglu_pallas.1} parent=1 // pred_fallthru
      _
    %v30 = vld [vmem:[%s0] sm:$0xf]
    %v31 = vld [vmem:[%s0 + $0x4] sm:$0xf]
    %v32 = vld [vmem:[#allocation2] sm:$0xff]
    %v33 = vld [vmem:[#allocation2 + $0x8] sm:$0xff]
    %v34 = vld [vmem:[%s1] sm:$0xf]
    %v35 = vld [vmem:[%s1 + $0x4] sm:$0xf]
    %v36 = vld [vmem:[%s1 + $0x8] sm:$0xf]
    %v37 = vld [vmem:[%s1 + $0xc] sm:$0xf]
    %v38 = vld [vmem:[%s1 + $0x10] sm:$0xf]
    %v39 = vld [vmem:[%s1 + $0x14] sm:$0xf]
    %v40 = vld [vmem:[%s1 + $0x18] sm:$0xf]
    %v41 = vld [vmem:[%s1 + $0x1c] sm:$0xf]
    %v42 = vld [vmem:[%s1 + $0x20] sm:$0xf]
    %v43 = vld [vmem:[%s1 + $0x24] sm:$0xf]
    %v44 = vld [vmem:[%s1 + $0x28] sm:$0xf]
    %v45 = vld [vmem:[%s1 + $0x2c] sm:$0xf]
    %v46 = vld [vmem:[%s1 + $0x30] sm:$0xf]
    %v47 = vld [vmem:[%s1 + $0x34] sm:$0xf]
    %v48 = vld [vmem:[%s1 + $0x38] sm:$0xf]
    %v49 = vld [vmem:[%s1 + $0x3c] sm:$0xf]
    %v52 = vunpack.c.l.b16 %v30
    %v53 = vunpack.c.l.b16 %v31
    %v54 = vpack.c.b16 %v53, %v52
    %v72 = vunpack.c.l.b16 %v34
    %v73 = vunpack.c.l.b16 %v35
    %v74 = vunpack.c.l.b16 %v36
    %v75 = vunpack.c.l.b16 %v37
    %v76 = vunpack.c.l.b16 %v38
    %v77 = vunpack.c.l.b16 %v39
    %v78 = vunpack.c.l.b16 %v40
    %v79 = vunpack.c.l.b16 %v41
    %v80 = vunpack.c.l.b16 %v42
    %v81 = vunpack.c.l.b16 %v43
    %v82 = vunpack.c.l.b16 %v44
    %v83 = vunpack.c.l.b16 %v45
    %v84 = vunpack.c.l.b16 %v46
    %v85 = vunpack.c.l.b16 %v47
    %v86 = vunpack.c.l.b16 %v48
    %v87 = vunpack.c.l.b16 %v49
    %v88 = vpack.c.b16 %v73, %v72
    %v89 = vpack.c.b16 %v75, %v74
    %v90 = vpack.c.b16 %v77, %v76
    %v91 = vpack.c.b16 %v79, %v78
    %v92 = vpack.c.b16 %v81, %v80
    %v93 = vpack.c.b16 %v83, %v82
    %v94 = vpack.c.b16 %v85, %v84
    %v95 = vpack.c.b16 %v87, %v86
    %104 = vmatprep.subr.bf16.mxu0 0
    %105 = vmatpush1.bf16.msra.mxu0 %v88
    %106 = vmatprep.subr.bf16.mxu0 0
    %107 = vmatpush1.bf16.msra.mxu0 %v89
    %108 = vmatprep.subr.bf16.mxu0 0
    %109 = vmatpush1.bf16.msra.mxu0 %v90
    %110 = vmatprep.subr.bf16.mxu0 0
    %111 = vmatpush1.bf16.msra.mxu0 %v91
    %112 = vmatprep.subr.bf16.mxu0 0
    %113 = vmatpush1.bf16.msra.mxu0 %v92
    %114 = vmatprep.subr.bf16.mxu0 0
    %115 = vmatpush1.bf16.msra.mxu0 %v93
    %116 = vmatprep.subr.bf16.mxu0 0
    %117 = vmatpush1.bf16.msra.mxu0 %v94
    %118 = vmatprep.subr.bf16.mxu0 0
    %119 = vmatpush1.bf16.msra.mxu0 %v95
    %120 = vmatprep.subr.bf16.mxu0 0
    %121 = vmatpush1.bf16.msra.mxu0 0
    %122 = vmatprep.subr.bf16.mxu0 0
    %123 = vmatpush1.bf16.msra.mxu0 0
    %124 = vmatprep.subr.bf16.mxu0 0
    %125 = vmatpush1.bf16.msra.mxu0 0
    %126 = vmatprep.subr.bf16.mxu0 0
    %127 = vmatpush1.bf16.msra.mxu0 0
    %128 = vmatprep.subr.bf16.mxu0 0
    %129 = vmatpush1.bf16.msra.mxu0 0
    %130 = vmatprep.subr.bf16.mxu0 0
    %131 = vmatpush1.bf16.msra.mxu0 0
    %132 = vmatprep.subr.bf16.mxu0 0
    %133 = vmatpush1.bf16.msra.mxu0 0
    %134 = vmatprep.subr.bf16.mxu0 0
    %135 = vmatpush1.bf16.msra.mxu0 0
    %136 = vmatprep.mubr.bf16.mxu0 0
    %137 = vmatmul.mubr.bf16.gmra.mrb[0].mxu0 %v54
    %v138 = vpop.f32.mrb[0].mxu0
    %v139 = vadd.f32 0.0, %v138
    %v140 = vpop.f32.mrb[0].mxu0
    %v141 = vpop.f32.mrb[0].mxu0
    %v142 = vadd.f32 0.0, %v141
    %v143 = vpop.f32.mrb[0].mxu0
    %144 = vdwg.mxu0
    %v145 = vadd.f32 %v32, %v139
    %v146 = vadd.f32 %v33, %v142
    %147 = vst [vmem:[#allocation2] sm:$0xff] %v145
    %148 = vst [vmem:[#allocation2 + $0x8] sm:$0xff] %v146
    %v149 = vld [vmem:[#allocation3] sm:$0xff]
    %v150 = vld [vmem:[#allocation3 + $0x8] sm:$0xff]
    %v151 = vld [vmem:[%s2] sm:$0xf]
    %v152 = vld [vmem:[%s2 + $0x4] sm:$0xf]
    %v153 = vld [vmem:[%s2 + $0x8] sm:$0xf]
    %v154 = vld [vmem:[%s2 + $0xc] sm:$0xf]
    %v155 = vld [vmem:[%s2 + $0x10] sm:$0xf]
    %v156 = vld [vmem:[%s2 + $0x14] sm:$0xf]
    %v157 = vld [vmem:[%s2 + $0x18] sm:$0xf]
    %v158 = vld [vmem:[%s2 + $0x1c] sm:$0xf]
    %v159 = vld [vmem:[%s2 + $0x20] sm:$0xf]
    %v160 = vld [vmem:[%s2 + $0x24] sm:$0xf]
    %v161 = vld [vmem:[%s2 + $0x28] sm:$0xf]
    %v162 = vld [vmem:[%s2 + $0x2c] sm:$0xf]
    %v163 = vld [vmem:[%s2 + $0x30] sm:$0xf]
    %v164 = vld [vmem:[%s2 + $0x34] sm:$0xf]
    %v165 = vld [vmem:[%s2 + $0x38] sm:$0xf]
    %v166 = vld [vmem:[%s2 + $0x3c] sm:$0xf]
    %v183 = vunpack.c.l.b16 %v151
    %v184 = vunpack.c.l.b16 %v152
    %v185 = vunpack.c.l.b16 %v153
    %v186 = vunpack.c.l.b16 %v154
    %v187 = vunpack.c.l.b16 %v155
    %v188 = vunpack.c.l.b16 %v156
    %v189 = vunpack.c.l.b16 %v157
    %v190 = vunpack.c.l.b16 %v158
    %v191 = vunpack.c.l.b16 %v159
    %v192 = vunpack.c.l.b16 %v160
    %v193 = vunpack.c.l.b16 %v161
    %v194 = vunpack.c.l.b16 %v162
    %v195 = vunpack.c.l.b16 %v163
    %v196 = vunpack.c.l.b16 %v164
    %v197 = vunpack.c.l.b16 %v165
    %v198 = vunpack.c.l.b16 %v166
    %v199 = vpack.c.b16 %v184, %v183
    %v200 = vpack.c.b16 %v186, %v185
    %v201 = vpack.c.b16 %v188, %v187
    %v202 = vpack.c.b16 %v190, %v189
    %v203 = vpack.c.b16 %v192, %v191
    %v204 = vpack.c.b16 %v194, %v193
    %v205 = vpack.c.b16 %v196, %v195
    %v206 = vpack.c.b16 %v198, %v197
    %215 = vmatprep.subr.bf16.mxu0 0
    %216 = vmatpush1.bf16.msra.mxu0 %v199
    %217 = vmatprep.subr.bf16.mxu0 0
    %218 = vmatpush1.bf16.msra.mxu0 %v200
    %219 = vmatprep.subr.bf16.mxu0 0
    %220 = vmatpush1.bf16.msra.mxu0 %v201
    %221 = vmatprep.subr.bf16.mxu0 0
    %222 = vmatpush1.bf16.msra.mxu0 %v202
    %223 = vmatprep.subr.bf16.mxu0 0
    %224 = vmatpush1.bf16.msra.mxu0 %v203
    %225 = vmatprep.subr.bf16.mxu0 0
    %226 = vmatpush1.bf16.msra.mxu0 %v204
    %227 = vmatprep.subr.bf16.mxu0 0
    %228 = vmatpush1.bf16.msra.mxu0 %v205
    %229 = vmatprep.subr.bf16.mxu0 0
    %230 = vmatpush1.bf16.msra.mxu0 %v206
    %231 = vmatprep.subr.bf16.mxu0 0
    %232 = vmatpush1.bf16.msra.mxu0 0
    %233 = vmatprep.subr.bf16.mxu0 0
    %234 = vmatpush1.bf16.msra.mxu0 0
    %235 = vmatprep.subr.bf16.mxu0 0
    %236 = vmatpush1.bf16.msra.mxu0 0
    %237 = vmatprep.subr.bf16.mxu0 0
    %238 = vmatpush1.bf16.msra.mxu0 0
    %239 = vmatprep.subr.bf16.mxu0 0
    %240 = vmatpush1.bf16.msra.mxu0 0
    %241 = vmatprep.subr.bf16.mxu0 0
    %242 = vmatpush1.bf16.msra.mxu0 0
    %243 = vmatprep.subr.bf16.mxu0 0
    %244 = vmatpush1.bf16.msra.mxu0 0
    %245 = vmatprep.subr.bf16.mxu0 0
    %246 = vmatpush1.bf16.msra.mxu0 0
    %247 = vmatprep.mubr.bf16.mxu0 0
    %248 = vmatmul.mubr.bf16.gmra.mrb[0].mxu0 %v54
    %v249 = vpop.f32.mrb[0].mxu0
    %v250 = vadd.f32 0.0, %v249
    %v251 = vpop.f32.mrb[0].mxu0
    %v252 = vpop.f32.mrb[0].mxu0
    %v253 = vadd.f32 0.0, %v252
    %v254 = vpop.f32.mrb[0].mxu0
    %255 = vdwg.mxu0
    %v256 = vadd.f32 %v149, %v250
    %v257 = vadd.f32 %v150, %v253
    %258 = vst [vmem:[#allocation3] sm:$0xff] %v256
    %259 = vst [vmem:[#allocation3 + $0x8] sm:$0xff] %v257
    // Predicated region
    $region26: #{geglu_pallas.1} parent=1 // pred_check
      %p260 = pneg %p22
    $region27: #{geglu_pallas.1} parent=1 // pred_check_branch
      %262 = sbr.rel (%p260) target = $region29
    $region28: #{geglu_pallas.1} parent=1 // pred_region
      %v263 = vld [vmem:[#allocation2] sm:$0xff]
      %v264 = vld [vmem:[#allocation2 + $0x8] sm:$0xff]
      %v265 = vld [vmem:[%s3] sm:$0x1]
      %v267 = vlaneseq
      %v268 = vshrl.u32 %v267, 7
      %v269 = vsub.s32 0, %v268
      %v270 = vrot.slane %v265, %v269
      %v272 = vadd.f32 %v263, %v270
      %v273 = vadd.f32 %v264, %v270
      %v274 = vld [vmem:[#allocation3] sm:$0xff]
      %v275 = vld [vmem:[#allocation3 + $0x8] sm:$0xff]
      %v276 = vld [vmem:[%s4] sm:$0x1]
      %v278 = vlaneseq
      %v279 = vshrl.u32 %v278, 7
      %v280 = vsub.s32 0, %v279
      %v281 = vrot.slane %v276, %v280
      %v283 = vadd.f32 %v274, %v281
      %v284 = vadd.f32 %v275, %v281
      %v285 = vmul.f32 %v283, 0.5
      %v286 = vmul.f32 %v284, 0.5
      %v287 = vmul.f32 %v283, 0.70710677
      %v288 = vmul.f32 %v284, 0.70710677
      %v289 = verf.f32.pop %v287
      %v290 = verf.f32.pop %v288
      %v291 = vadd.f32 %v289, 1.0
      %v292 = vadd.f32 %v290, 1.0
      %v293 = vmul.f32 %v285, %v291
      %v294 = vmul.f32 %v286, %v292
      %v295 = vmul.f32 %v272, %v293
      %v296 = vmul.f32 %v273, %v294
      %297 = vst [vmem:[#allocation4] sm:$0xff] %v295
      %298 = vst [vmem:[#allocation4 + $0x8] sm:$0xff] %v296
    $region29: #{geglu_pallas.1} parent=1 // pred_fallthru
      _
    // Predicated region
    $region30: #{geglu_pallas.1} parent=1 // pred_check
      _
    $region31: #{geglu_pallas.1} parent=1 // pred_check_branch
      %300 = sbr.rel (0) target = $region33
    $region32: #{geglu_pallas.1} parent=1 // pred_region
      %s302 = ssub.s32 256, 256
      %303 = vsyncadd [#allocation5], %s302
      %s304 = sshll.u32 [#allocation4], 4
      %s305 = int_to_ptr.vmem [resolvable:$true] %s304
      %310 = dma.vmem_to_hbm [thread:$0]  %s305, 256, %s5, [#allocation5], 128, 128, 8
    $region33: #{geglu_pallas.1} parent=1 // pred_fallthru
      _
    // Predicated region
    $region34: #{geglu_pallas.1} parent=1 // pred_check
      _
    $region35: #{geglu_pallas.1} parent=1 // pred_check_branch
      %312 = sbr.rel (0) target = $region37
    $region36: #{geglu_pallas.1} parent=1 // pred_region
      %313 = dma.done [#allocation5], 256
    $region37: #{geglu_pallas.1} parent=1 // pred_fallthru
      _
    %314 = vsyncpa [#allocation5], 1

</llo_original>
